<compile_context>
chip_gen: v5e
topology: v5e:2x2
jax: 0.10.0
libtpu: 0.0.40
codegen_flags: <defaults>
</compile_context>

<pallas_src>
import numpy as np
import jax
import jax.numpy as jnp
from jax.experimental import pallas as pl
from jax.experimental.pallas import tpu as pltpu


# ----------------------------------------------------------------------------
# In-kernel helper: fused training-mode BatchNorm1d + ReLU (one pass, one FMA).
# ----------------------------------------------------------------------------
def _bn_relu(y, gamma, beta, eps=1e-5):
    """y: (N, Ep) f32; gamma/beta: (1, Ep) f32. Biased variance (PyTorch train)."""
    n = y.shape[0]
    inv_n = 1.0 / float(n)
    s = jnp.sum(y, axis=0, keepdims=True)
    ss = jnp.sum(y * y, axis=0, keepdims=True)
    mean = s * inv_n
    var = jnp.maximum(ss * inv_n - mean * mean, 0.0)          # one-pass biased var
    scale = gamma * jax.lax.rsqrt(var + eps)
    shift = beta - mean * scale
    return jnp.maximum(y * scale + shift, 0.0)                # BN + ReLU fused


# ----------------------------------------------------------------------------
# Pallas kernel: whole (small) problem resident in VMEM, single grid step.
# Five MXU dots total: conv1, 3x pool+shift, conv2, pool2, conv3.
# ----------------------------------------------------------------------------
def _encoder_kernel(xcol_ref, w1_ref, g1_ref, be1_ref, p1_ref,
                    w2_ref, g2_ref, be2_ref, p2_ref, w3_ref, b3_ref, o_ref):
    f32 = jnp.float32

    # conv1: single im2col matmul (B*L1, 3*Cin) @ (3*Cin, Ep), bf16 -> f32 acc.
    y1 = jnp.dot(xcol_ref[...], w1_ref[...], preferred_element_type=f32)
    # bn1 + relu1 (conv bias b1 cancels exactly under training-mode BN -> folded)
    h1 = _bn_relu(y1, g1_ref[...], be1_ref[...])

    # pool1 + conv2 im2col: each tap k of conv2 consumes avgpool(h1) shifted by k;
    # the constant matrices p1_ref[k] implement (avgpool(3,2) + shift) as MXU dots.
    taps = [jnp.dot(p1_ref[k], h1, preferred_element_type=f32)
            for k in range(p1_ref.shape[0])]                  # 3 x (B*L2, Ep)
    a2 = jnp.concatenate(taps, axis=-1).astype(jnp.bfloat16)  # (B*L2, 3*Ep), lane-aligned
    # conv2: one packed matmul (B*L2, 3*Ep) @ (3*Ep, Ep)
    y2 = jnp.dot(a2, w2_ref[...], preferred_element_type=f32)
    # bn2 + relu2 (b2 folded away as above)
    h2 = _bn_relu(y2, g2_ref[...], be2_ref[...])

    # pool2 as a single constant-matrix MXU dot: (B*Lp2, B*L2) @ (B*L2, Ep)
    pooled2 = jnp.dot(p2_ref[...], h2, preferred_element_type=f32)
    # conv3 (k=1): one matmul + bias
    y3 = jnp.dot(pooled2.astype(jnp.bfloat16), w3_ref[...],
                 preferred_element_type=f32) + b3_ref[...]
    o_ref[...] = y3.astype(o_ref.dtype)


# ----------------------------------------------------------------------------
# Host-side constant builders (pure layout / constant prep, no activation math)
# ----------------------------------------------------------------------------
def _pool_matrix(L, Lp, B):
    """Block-diagonal AvgPool1d(3, stride=2) matrix: (B*Lp, B*L)."""
    P = np.zeros((Lp, L), np.float32)
    for p in range(Lp):
        P[p, 2 * p:2 * p + 3] = 1.0 / 3.0
    return jnp.asarray(np.kron(np.eye(B, dtype=np.float32), P))


def _pool_shift_matrices(L_in, L_out, B, K=3):
    """mats[k] @ h  ==  avgpool1d(3,2)(h) rows (p+k), stacked over (b, p).
    Shapes: (K, B*L_out, B*L_in)."""
    mats = np.zeros((K, B * L_out, B * L_in), np.float32)
    for k in range(K):
        for b in range(B):
            for p in range(L_out):
                row = b * L_out + p
                start = b * L_in + 2 * (p + k)
                mats[k, row, start:start + 3] = 1.0 / 3.0
    return jnp.asarray(mats)


# ----------------------------------------------------------------------------
# Wrapper: packs weights (PyTorch layout -> lane-padded matmul layout), builds
# the host-side im2col of the input and the constant pooling matrices, then
# invokes one pallas_call.
# ----------------------------------------------------------------------------
def encoder_image_sdtw_v2(videos_tuple, params):
    """videos_tuple = (videos, videos_origin, lengths, videos_mask); only
    `videos` (B, T, img_dim) is consumed, exactly like the PyTorch module."""
    videos, _videos_origin, _lengths, _videos_mask = videos_tuple
    (w1_t, _b1, g1, be1, w2_t, _b2, g2, be2, w3_t, b3) = params
    # NOTE: _b1/_b2 (conv biases before BatchNorm in training mode) cancel
    #       exactly in the normalized output and are therefore folded away.

    B, T, Cin = videos.shape
    E = w1_t.shape[0]
    if T < 13:
        raise ValueError(f"T={T} too small: need T >= 13 for a non-empty output.")

    L1 = T - 2                      # conv1 (k=3)
    Lp1 = (L1 - 3) // 2 + 1         # pool1 (k=3, s=2)
    L2 = Lp1 - 2                    # conv2 (k=3)
    Lp2 = (L2 - 3) // 2 + 1         # pool2 (k=3, s=2); conv3 is k=1
    Ep = max(128, ((E + 127) // 128) * 128)   # lane-dense channel padding

    # ---- host-side im2col of the raw input (layout plumbing only) ----
    xcol = jnp.concatenate([videos[:, k:k + L1, :] for k in range(3)], axis=-1)
    xcol = xcol.reshape(B * L1, 3 * Cin).astype(jnp.bfloat16)

    # ---- weight packing: PyTorch (E_out, C_in, K) -> (K*C_in_pad, Ep), bf16 ----
    def pack_w(w_torch, cin_pad):
        Eo, Ci, K = w_torch.shape
        w = jnp.transpose(w_torch, (2, 1, 0))                     # (K, Cin, Eout)
        w = jnp.pad(w, ((0, 0), (0, cin_pad - Ci), (0, Ep - Eo)))
        return w.reshape(K * cin_pad, Ep).astype(jnp.bfloat16)

    w1p = pack_w(w1_t, Cin)          # (3*Cin, Ep)
    w2p = pack_w(w2_t, Ep)           # (3*Ep, Ep)
    w3p = pack_w(w3_t, Ep)           # (Ep,  Ep)

    def pad_vec(v):
        return jnp.pad(v.astype(jnp.float32), (0, Ep - v.shape[0])).reshape(1, Ep)

    g1p, be1p, g2p, be2p, b3p = map(pad_vec, (g1, be1, g2, be2, b3))

    # ---- constant pooling matrices (pooling runs on the idle MXU) ----
    p1s = _pool_shift_matrices(L1, L2, B)     # (3, B*L2, B*L1): pool1 + conv2 tap shift
    p2 = _pool_matrix(L2, Lp2, B)             # (B*Lp2, B*L2):   pool2

    vmem = pl.BlockSpec(memory_space=pltpu.MemorySpace.VMEM)
    args = (xcol, w1p, g1p, be1p, p1s, w2p, g2p, be2p, p2, w3p, b3p)

    # Working set is well under 1 MiB at these shapes, so the default scoped
    # VMEM limit is fine on v5e/v6e/v7x and no grid / pipelining is needed.
    out2d = pl.pallas_call(
        _encoder_kernel,
        out_shape=jax.ShapeDtypeStruct((B * Lp2, Ep), jnp.float32),
        in_specs=[vmem] * len(args),
        out_specs=vmem,
    )(*args)

    # Host-side: drop the lane padding and restore (B, L_out, E).
    return out2d[:, :E].reshape(B, Lp2, E)


# ----------------------------------------------------------------------------
# Parameters in PyTorch layout (Conv1d weight: (out_c, in_c, k)).
# ----------------------------------------------------------------------------
def make_params(key, img_dim, embed_size):
    ks = jax.random.split(key, 10)

    def xavier_normal(k, out_c, in_c, ksize):
        fan_in = in_c * ksize
        fan_out = out_c * ksize
        std = float(np.sqrt(2.0 / (fan_in + fan_out)))
        return std * jax.random.normal(k, (out_c, in_c, ksize), jnp.float32)

    w1 = xavier_normal(ks[0], embed_size, img_dim, 3)
    w2 = xavier_normal(ks[1], embed_size, embed_size, 3)
    w3 = xavier_normal(ks[2], embed_size, embed_size, 1)
    # init_weights() zeroes the conv biases and BN affine defaults to (1, 0);
    # we randomize them so the test also exercises loaded-checkpoint values.
    b1 = 0.1 * jax.random.normal(ks[3], (embed_size,), jnp.float32)
    b2 = 0.1 * jax.random.normal(ks[4], (embed_size,), jnp.float32)
    b3 = 0.1 * jax.random.normal(ks[5], (embed_size,), jnp.float32)
    g1 = 1.0 + 0.1 * jax.random.normal(ks[6], (embed_size,), jnp.float32)
    g2 = 1.0 + 0.1 * jax.random.normal(ks[7], (embed_size,), jnp.float32)
    be1 = 0.1 * jax.random.normal(ks[8], (embed_size,), jnp.float32)
    be2 = 0.1 * jax.random.normal(ks[9], (embed_size,), jnp.float32)
    return (w1, b1, g1, be1, w2, b2, g2, be2, w3, b3)


# ----------------------------------------------------------------------------
# Independent straight-line f32 reference of the PyTorch forward (no im2col,
# no weight packing, no BN fusion) -- validates the kernel's restructuring.
# ----------------------------------------------------------------------------
def _reference_forward(videos, w1_t, b1, g1, be1, w2_t, b2, g2, be2, w3_t, b3,
                       eps=1e-5):
    def conv1d(x, w_t, b):                      # x: (B, L, Cin); w_t: (E, Cin, K)
        K = w_t.shape[2]
        Lo = x.shape[1] - K + 1
        acc = jnp.zeros((x.shape[0], Lo, w_t.shape[0]), jnp.float32)
        for k in range(K):
            acc = acc + jnp.einsum('blc,ec->ble', x[:, k:k + Lo, :], w_t[:, :, k])
        return acc + b[None, None, :]

    def bn(x, g, be):                           # training-mode batch stats, biased var
        mean = jnp.mean(x, axis=(0, 1), keepdims=True)
        var = jnp.mean((x - mean) ** 2, axis=(0, 1), keepdims=True)
        return (x - mean) / jnp.sqrt(var + eps) * g[None, None, :] + be[None, None, :]

    def pool(x):                                # AvgPool1d(3, stride=2)
        Lp = (x.shape[1] - 3) // 2 + 1
        return jnp.stack(
            [(x[:, 2 * p] + x[:, 2 * p + 1] + x[:, 2 * p + 2]) / 3.0
             for p in range(Lp)], axis=1)

    h = conv1d(videos, w1_t, b1)
    h = bn(h, g1, be1)
    h = jnp.maximum(h, 0.0)
    h = pool(h)
    h = conv1d(h, w2_t, b2)
    h = bn(h, g2, be2)
    h = jnp.maximum(h, 0.0)
    h = pool(h)
    h = conv1d(h, w3_t, b3)
    return h                                    # (B, L_out, E)


if __name__ == "__main__":
    B, T, IMG_DIM, EMBED = 2, 32, 4, 32

    key = jax.random.PRNGKey(0)
    k_v, k_o, k_p = jax.random.split(key, 3)

    videos = jax.random.normal(k_v, (B, T, IMG_DIM), jnp.float32)
    videos_origin = jax.random.normal(k_o, (B, IMG_DIM), jnp.float32)   # unused
    lengths = jnp.full((B,), T, jnp.int32)                              # unused
    videos_mask = jnp.ones((B, T), jnp.float32)                         # unused
    videos_tuple = (videos, videos_origin, lengths, videos_mask)

    params = make_params(k_p, IMG_DIM, EMBED)

    out = encoder_image_sdtw_v2(videos_tuple, params)
    out = jax.block_until_ready(out)

    ref = _reference_forward(videos, *params)
    assert out.shape == ref.shape, (out.shape, ref.shape)
    # Tolerance reflects bf16 rounding at the MXU boundaries (reference is pure f32).
    np.testing.assert_allclose(np.asarray(out), np.asarray(ref),
                               rtol=5e-2, atol=5e-2)

    print("KERNEL_OK")
</pallas_src>

<mosaic_0001>
module attributes {stable_mosaic.version = 11 : i64} {
  func.func @_encoder_kernel(%arg0: memref<60x12xbf16, #tpu.memory_space<vmem>>, %arg1: memref<12x128xbf16, #tpu.memory_space<vmem>>, %arg2: memref<1x128xf32, #tpu.memory_space<vmem>>, %arg3: memref<1x128xf32, #tpu.memory_space<vmem>>, %arg4: memref<3x24x60xf32, #tpu.memory_space<vmem>>, %arg5: memref<384x128xbf16, #tpu.memory_space<vmem>>, %arg6: memref<1x128xf32, #tpu.memory_space<vmem>>, %arg7: memref<1x128xf32, #tpu.memory_space<vmem>>, %arg8: memref<10x24xf32, #tpu.memory_space<vmem>>, %arg9: memref<128x128xbf16, #tpu.memory_space<vmem>>, %arg10: memref<1x128xf32, #tpu.memory_space<vmem>>, %arg11: memref<10x128xf32, #tpu.memory_space<vmem>>) attributes {dimension_semantics = [], scalar_prefetch = 0 : i64, scratch_operands = 0 : i64, tpu.core_type = #tpu.core_type<tc>} {
    %c0 = arith.constant 0 : index
    %c0_0 = arith.constant 0 : index
    %0 = vector.load %arg0[%c0, %c0_0] : memref<60x12xbf16, #tpu.memory_space<vmem>>, vector<60x12xbf16>
    %c0_1 = arith.constant 0 : index
    %c0_2 = arith.constant 0 : index
    %1 = vector.load %arg1[%c0_1, %c0_2] : memref<12x128xbf16, #tpu.memory_space<vmem>>, vector<12x128xbf16>
    %cst = arith.constant dense<0.000000e+00> : vector<60x128xf32>
    %2 = tpu.matmul %0, %1, %cst {dimension_numbers = #tpu.dot_dimension_numbers<[1], [0], [0], [1], [0, 0, 1, 1], [], []>} : vector<60x12xbf16>, vector<12x128xbf16>, vector<60x128xf32> -> vector<60x128xf32>
    %c0_3 = arith.constant 0 : index
    %c0_4 = arith.constant 0 : index
    %3 = vector.load %arg2[%c0_3, %c0_4] : memref<1x128xf32, #tpu.memory_space<vmem>>, vector<1x128xf32>
    %c0_5 = arith.constant 0 : index
    %c0_6 = arith.constant 0 : index
    %4 = vector.load %arg3[%c0_5, %c0_6] : memref<1x128xf32, #tpu.memory_space<vmem>>, vector<1x128xf32>
    %cst_7 = arith.constant dense<0.000000e+00> : vector<128xf32>
    %5 = vector.multi_reduction <add>, %2, %cst_7 [0] : vector<60x128xf32> to vector<128xf32>
    %6 = vector.shape_cast %5 : vector<128xf32> to vector<1x128xf32>
    %7 = arith.mulf %2, %2 : vector<60x128xf32>
    %cst_8 = arith.constant dense<0.000000e+00> : vector<128xf32>
    %8 = vector.multi_reduction <add>, %7, %cst_8 [0] : vector<60x128xf32> to vector<128xf32>
    %9 = vector.shape_cast %8 : vector<128xf32> to vector<1x128xf32>
    %cst_9 = arith.constant 0.0166666675 : f32
    %10 = vector.broadcast %cst_9 : f32 to vector<1x128xf32>
    %11 = arith.mulf %6, %10 : vector<1x128xf32>
    %cst_10 = arith.constant 0.0166666675 : f32
    %12 = vector.broadcast %cst_10 : f32 to vector<1x128xf32>
    %13 = arith.mulf %9, %12 : vector<1x128xf32>
    %14 = arith.mulf %11, %11 : vector<1x128xf32>
    %15 = arith.subf %13, %14 : vector<1x128xf32>
    %cst_11 = arith.constant 0.000000e+00 : f32
    %16 = vector.broadcast %cst_11 : f32 to vector<1x128xf32>
    %17 = arith.maximumf %15, %16 : vector<1x128xf32>
    %cst_12 = arith.constant 9.99999974E-6 : f32
    %18 = vector.broadcast %cst_12 : f32 to vector<1x128xf32>
    %19 = arith.addf %17, %18 : vector<1x128xf32>
    %20 = math.rsqrt %19 : vector<1x128xf32>
    %21 = arith.mulf %3, %20 : vector<1x128xf32>
    %22 = arith.mulf %11, %21 : vector<1x128xf32>
    %23 = arith.subf %4, %22 : vector<1x128xf32>
    %24 = vector.broadcast %21 : vector<1x128xf32> to vector<60x128xf32>
    %25 = arith.mulf %2, %24 : vector<60x128xf32>
    %26 = vector.broadcast %23 : vector<1x128xf32> to vector<60x128xf32>
    %27 = arith.addf %25, %26 : vector<60x128xf32>
    %cst_13 = arith.constant 0.000000e+00 : f32
    %28 = vector.broadcast %cst_13 : f32 to vector<60x128xf32>
    %29 = arith.maximumf %27, %28 : vector<60x128xf32>
    %c0_14 = arith.constant 0 : index
    %c0_15 = arith.constant 0 : index
    %c0_16 = arith.constant 0 : index
    %30 = vector.load %arg4[%c0_14, %c0_15, %c0_16] : memref<3x24x60xf32, #tpu.memory_space<vmem>>, vector<1x24x60xf32>
    %31 = vector.shape_cast %30 : vector<1x24x60xf32> to vector<24x60xf32>
    %cst_17 = arith.constant dense<0.000000e+00> : vector<24x128xf32>
    %32 = tpu.matmul %31, %29, %cst_17 {dimension_numbers = #tpu.dot_dimension_numbers<[1], [0], [0], [1], [0, 0, 1, 1], [], []>} : vector<24x60xf32>, vector<60x128xf32>, vector<24x128xf32> -> vector<24x128xf32>
    %c1 = arith.constant 1 : index
    %c0_18 = arith.constant 0 : index
    %c0_19 = arith.constant 0 : index
    %33 = vector.load %arg4[%c1, %c0_18, %c0_19] : memref<3x24x60xf32, #tpu.memory_space<vmem>>, vector<1x24x60xf32>
    %34 = vector.shape_cast %33 : vector<1x24x60xf32> to vector<24x60xf32>
    %cst_20 = arith.constant dense<0.000000e+00> : vector<24x128xf32>
    %35 = tpu.matmul %34, %29, %cst_20 {dimension_numbers = #tpu.dot_dimension_numbers<[1], [0], [0], [1], [0, 0, 1, 1], [], []>} : vector<24x60xf32>, vector<60x128xf32>, vector<24x128xf32> -> vector<24x128xf32>
    %c2 = arith.constant 2 : index
    %c0_21 = arith.constant 0 : index
    %c0_22 = arith.constant 0 : index
    %36 = vector.load %arg4[%c2, %c0_21, %c0_22] : memref<3x24x60xf32, #tpu.memory_space<vmem>>, vector<1x24x60xf32>
    %37 = vector.shape_cast %36 : vector<1x24x60xf32> to vector<24x60xf32>
    %cst_23 = arith.constant dense<0.000000e+00> : vector<24x128xf32>
    %38 = tpu.matmul %37, %29, %cst_23 {dimension_numbers = #tpu.dot_dimension_numbers<[1], [0], [0], [1], [0, 0, 1, 1], [], []>} : vector<24x60xf32>, vector<60x128xf32>, vector<24x128xf32> -> vector<24x128xf32>
    %39 = tpu.concatenate %32, %35, %38 in 1 : vector<24x128xf32>, vector<24x128xf32>, vector<24x128xf32> -> vector<24x384xf32>
    %40 = arith.truncf %39 : vector<24x384xf32> to vector<24x384xbf16>
    %c0_24 = arith.constant 0 : index
    %c0_25 = arith.constant 0 : index
    %41 = vector.load %arg5[%c0_24, %c0_25] : memref<384x128xbf16, #tpu.memory_space<vmem>>, vector<384x128xbf16>
    %cst_26 = arith.constant dense<0.000000e+00> : vector<24x128xf32>
    %42 = tpu.matmul %40, %41, %cst_26 {dimension_numbers = #tpu.dot_dimension_numbers<[1], [0], [0], [1], [0, 0, 1, 1], [], []>} : vector<24x384xbf16>, vector<384x128xbf16>, vector<24x128xf32> -> vector<24x128xf32>
    %c0_27 = arith.constant 0 : index
    %c0_28 = arith.constant 0 : index
    %43 = vector.load %arg6[%c0_27, %c0_28] : memref<1x128xf32, #tpu.memory_space<vmem>>, vector<1x128xf32>
    %c0_29 = arith.constant 0 : index
    %c0_30 = arith.constant 0 : index
    %44 = vector.load %arg7[%c0_29, %c0_30] : memref<1x128xf32, #tpu.memory_space<vmem>>, vector<1x128xf32>
    %cst_31 = arith.constant dense<0.000000e+00> : vector<128xf32>
    %45 = vector.multi_reduction <add>, %42, %cst_31 [0] : vector<24x128xf32> to vector<128xf32>
    %46 = vector.shape_cast %45 : vector<128xf32> to vector<1x128xf32>
    %47 = arith.mulf %42, %42 : vector<24x128xf32>
    %cst_32 = arith.constant dense<0.000000e+00> : vector<128xf32>
    %48 = vector.multi_reduction <add>, %47, %cst_32 [0] : vector<24x128xf32> to vector<128xf32>
    %49 = vector.shape_cast %48 : vector<128xf32> to vector<1x128xf32>
    %cst_33 = arith.constant 0.0416666679 : f32
    %50 = vector.broadcast %cst_33 : f32 to vector<1x128xf32>
    %51 = arith.mulf %46, %50 : vector<1x128xf32>
    %cst_34 = arith.constant 0.0416666679 : f32
    %52 = vector.broadcast %cst_34 : f32 to vector<1x128xf32>
    %53 = arith.mulf %49, %52 : vector<1x128xf32>
    %54 = arith.mulf %51, %51 : vector<1x128xf32>
    %55 = arith.subf %53, %54 : vector<1x128xf32>
    %cst_35 = arith.constant 0.000000e+00 : f32
    %56 = vector.broadcast %cst_35 : f32 to vector<1x128xf32>
    %57 = arith.maximumf %55, %56 : vector<1x128xf32>
    %cst_36 = arith.constant 9.99999974E-6 : f32
    %58 = vector.broadcast %cst_36 : f32 to vector<1x128xf32>
    %59 = arith.addf %57, %58 : vector<1x128xf32>
    %60 = math.rsqrt %59 : vector<1x128xf32>
    %61 = arith.mulf %43, %60 : vector<1x128xf32>
    %62 = arith.mulf %51, %61 : vector<1x128xf32>
    %63 = arith.subf %44, %62 : vector<1x128xf32>
    %64 = vector.broadcast %61 : vector<1x128xf32> to vector<24x128xf32>
    %65 = arith.mulf %42, %64 : vector<24x128xf32>
    %66 = vector.broadcast %63 : vector<1x128xf32> to vector<24x128xf32>
    %67 = arith.addf %65, %66 : vector<24x128xf32>
    %cst_37 = arith.constant 0.000000e+00 : f32
    %68 = vector.broadcast %cst_37 : f32 to vector<24x128xf32>
    %69 = arith.maximumf %67, %68 : vector<24x128xf32>
    %c0_38 = arith.constant 0 : index
    %c0_39 = arith.constant 0 : index
    %70 = vector.load %arg8[%c0_38, %c0_39] : memref<10x24xf32, #tpu.memory_space<vmem>>, vector<10x24xf32>
    %cst_40 = arith.constant dense<0.000000e+00> : vector<10x128xf32>
    %71 = tpu.matmul %70, %69, %cst_40 {dimension_numbers = #tpu.dot_dimension_numbers<[1], [0], [0], [1], [0, 0, 1, 1], [], []>} : vector<10x24xf32>, vector<24x128xf32>, vector<10x128xf32> -> vector<10x128xf32>
    %72 = arith.truncf %71 : vector<10x128xf32> to vector<10x128xbf16>
    %c0_41 = arith.constant 0 : index
    %c0_42 = arith.constant 0 : index
    %73 = vector.load %arg9[%c0_41, %c0_42] : memref<128x128xbf16, #tpu.memory_space<vmem>>, vector<128x128xbf16>
    %cst_43 = arith.constant dense<0.000000e+00> : vector<10x128xf32>
    %74 = tpu.matmul %72, %73, %cst_43 {dimension_numbers = #tpu.dot_dimension_numbers<[1], [0], [0], [1], [0, 0, 1, 1], [], []>} : vector<10x128xbf16>, vector<128x128xbf16>, vector<10x128xf32> -> vector<10x128xf32>
    %c0_44 = arith.constant 0 : index
    %c0_45 = arith.constant 0 : index
    %75 = vector.load %arg10[%c0_44, %c0_45] : memref<1x128xf32, #tpu.memory_space<vmem>>, vector<1x128xf32>
    %76 = vector.broadcast %75 : vector<1x128xf32> to vector<10x128xf32>
    %77 = arith.addf %74, %76 : vector<10x128xf32>
    %c0_46 = arith.constant 0 : index
    %c0_47 = arith.constant 0 : index
    %78 = vector.load %arg11[%c0_46, %c0_47] : memref<10x128xf32, #tpu.memory_space<vmem>>, vector<10x128xf32>
    tpu.vector_store %arg11[%c0_46, %c0_47], %77 {strides = array<i32>} : memref<10x128xf32, #tpu.memory_space<vmem>>, vector<10x128xf32>,
    return
  }
}

</mosaic_0001>

<llo_original>
// kernel: tpu_custom_call.1
$region0: #{tpu_custom_call.1}
  #allocation0 [shape = 'u32[]', space=smem, size = 0x4, offset = 0x4, fixed_abs, tag = 'smem constant byte address 0x4 - core index']
  #allocation1 [shape = 'u32[72,128]{1,0:T(1,128)}', space=vmem, size = 0x9000, scoped, tag = 'internal scratch']
  %s0 = inlined_call_operand.vmem [shape: bf16[60,12], index: 0, kind: input, shape index: {}]
  %s1 = inlined_call_operand.vmem [shape: bf16[12,128], index: 1, kind: input, shape index: {}]
  %s2 = inlined_call_operand.vmem [shape: f32[1,128], index: 2, kind: input, shape index: {}]
  %s3 = inlined_call_operand.vmem [shape: f32[1,128], index: 3, kind: input, shape index: {}]
  %s4 = inlined_call_operand.hbm [shape: f32[3,24,60], index: 4, kind: input, shape index: {}]
  %s5 = inlined_call_operand.hbm [shape: bf16[384,128], index: 5, kind: input, shape index: {}]
  %s6 = inlined_call_operand.vmem [shape: f32[1,128], index: 6, kind: input, shape index: {}]
  %s7 = inlined_call_operand.vmem [shape: f32[1,128], index: 7, kind: input, shape index: {}]
  %s8 = inlined_call_operand.vmem [shape: f32[10,24], index: 8, kind: input, shape index: {}]
  %s9 = inlined_call_operand.hbm [shape: bf16[128,128], index: 9, kind: input, shape index: {}]
  %s10 = inlined_call_operand.vmem [shape: f32[1,128], index: 10, kind: input, shape index: {}]
  %s11 = inlined_call_operand.hbm [shape: f32[10,128], index: 11, kind: output, shape index: {}]
  %s12 = sld [smem:[#allocation0]]
  $region66: #{tpu_custom_call.1} parent=0
    _
  %s14 = ssub.s32 1, %s12
  %s15 = scalar_select 0, %s14, %s12
  $region1: #{tpu_custom_call.1} parent=0
    #allocation2 [shape = 'u8[36864]{0}', space=vmem, size = 0x9000, scoped, tag = 'input window, operand 4, single buffered']
    #allocation3 [shape = 's32[1]{0}', space=sflag, size = 0x4, scoped, tag = 'scoped memory for tpu_custom_call.1']
    #allocation4 [shape = 's32[1]{0}', space=sflag, size = 0x4, scoped, tag = 'scoped memory for tpu_custom_call.1']
    #allocation5 [shape = 'u8[98304]{0}', space=vmem, size = 0x18000, scoped, tag = 'input window, operand 5, single buffered']
    #allocation6 [shape = 's32[1]{0}', space=sflag, size = 0x4, scoped, tag = 'scoped memory for tpu_custom_call.1']
    #allocation7 [shape = 'u8[32768]{0}', space=vmem, size = 0x8000, scoped, tag = 'input window, operand 9, single buffered']
    #allocation8 [shape = 'u8[8192]{0}', space=vmem, size = 0x2000, scoped, tag = 'output window, operand 0, single buffered']
    %16 = vsyncpa [#allocation3], 0
    %17 = vsyncpa [#allocation6], 0
    %18 = vsyncpa [#allocation4], 0
    // Predicated region
    $region2: #{tpu_custom_call.1} parent=1 // pred_check
      _
    $region3: #{tpu_custom_call.1} parent=1 // pred_check_branch
      %20 = sbr.rel (0) target = $region5
    $region4: #{tpu_custom_call.1} parent=1 // pred_region
      _
    $region5: #{tpu_custom_call.1} parent=1 // pred_fallthru
      _
    // Predicated region
    $region6: #{tpu_custom_call.1} parent=1 // pred_check
      _
    $region7: #{tpu_custom_call.1} parent=1 // pred_check_branch
      %22 = sbr.rel (0) target = $region9
    $region8: #{tpu_custom_call.1} parent=1 // pred_region
      _
    $region9: #{tpu_custom_call.1} parent=1 // pred_fallthru
      _
    // Predicated region
    $region10: #{tpu_custom_call.1} parent=1 // pred_check
      _
    $region11: #{tpu_custom_call.1} parent=1 // pred_check_branch
      %24 = sbr.rel (0) target = $region13
    $region12: #{tpu_custom_call.1} parent=1 // pred_region
      _
    $region13: #{tpu_custom_call.1} parent=1 // pred_fallthru
      _
    // Predicated region
    $region14: #{tpu_custom_call.1} parent=1 // pred_check
      _
    $region15: #{tpu_custom_call.1} parent=1 // pred_check_branch
      %26 = sbr.rel (0) target = $region17
    $region16: #{tpu_custom_call.1} parent=1 // pred_region
      _
    $region17: #{tpu_custom_call.1} parent=1 // pred_fallthru
      _
    // Predicated region
    $region18: #{tpu_custom_call.1} parent=1 // pred_check
      _
    $region19: #{tpu_custom_call.1} parent=1 // pred_check_branch
      %28 = sbr.rel (0) target = $region21
    $region20: #{tpu_custom_call.1} parent=1 // pred_region
      %30 = vsyncadd [#allocation3], 0
      %s31 = sshll.u32 %s4, 4
      %s32 = int_to_ptr.hbm [resolvable:$true] %s31
      %s33 = sshll.u32 [#allocation2], 4
      %s34 = int_to_ptr.vmem [resolvable:$true] %s33
      %39 = dma.hbm_to_vmem [thread:$0]  %s32, 1152, %s34, [#allocation3], 128, 128, 8
    $region21: #{tpu_custom_call.1} parent=1 // pred_fallthru
      _
    // Predicated region
    $region22: #{tpu_custom_call.1} parent=1 // pred_check
      _
    $region23: #{tpu_custom_call.1} parent=1 // pred_check_branch
      %41 = sbr.rel (0) target = $region25
    $region24: #{tpu_custom_call.1} parent=1 // pred_region
      %43 = vsyncadd [#allocation6], 0
      %s44 = sshll.u32 %s5, 4
      %s45 = int_to_ptr.hbm [resolvable:$true] %s44
      %s46 = sshll.u32 [#allocation5], 4
      %s47 = int_to_ptr.vmem [resolvable:$true] %s46
      %52 = dma.hbm_to_vmem [thread:$0]  %s45, 3072, %s47, [#allocation6], 64, 64, 4
    $region25: #{tpu_custom_call.1} parent=1 // pred_fallthru
      _
    // Predicated region
    $region26: #{tpu_custom_call.1} parent=1 // pred_check
      _
    $region27: #{tpu_custom_call.1} parent=1 // pred_check_branch
      %54 = sbr.rel (0) target = $region29
    $region28: #{tpu_custom_call.1} parent=1 // pred_region
      _
    $region29: #{tpu_custom_call.1} parent=1 // pred_fallthru
      _
    // Predicated region
    $region30: #{tpu_custom_call.1} parent=1 // pred_check
      _
    $region31: #{tpu_custom_call.1} parent=1 // pred_check_branch
      %56 = sbr.rel (0) target = $region33
    $region32: #{tpu_custom_call.1} parent=1 // pred_region
      _
    $region33: #{tpu_custom_call.1} parent=1 // pred_fallthru
      _
    // Predicated region
    $region34: #{tpu_custom_call.1} parent=1 // pred_check
      _
    $region35: #{tpu_custom_call.1} parent=1 // pred_check_branch
      %58 = sbr.rel (0) target = $region37
    $region36: #{tpu_custom_call.1} parent=1 // pred_region
      _
    $region37: #{tpu_custom_call.1} parent=1 // pred_fallthru
      _
    // Predicated region
    $region38: #{tpu_custom_call.1} parent=1 // pred_check
      _
    $region39: #{tpu_custom_call.1} parent=1 // pred_check_branch
      %60 = sbr.rel (0) target = $region41
    $region40: #{tpu_custom_call.1} parent=1 // pred_region
      %62 = vsyncadd [#allocation6], 0
      %s63 = sshll.u32 %s9, 4
      %s64 = int_to_ptr.hbm [resolvable:$true] %s63
      %s65 = sshll.u32 [#allocation7], 4
      %s66 = int_to_ptr.vmem [resolvable:$true] %s65
      %71 = dma.hbm_to_vmem [thread:$0]  %s64, 1024, %s66, [#allocation6], 64, 64, 4
    $region41: #{tpu_custom_call.1} parent=1 // pred_fallthru
      _
    // Predicated region
    $region42: #{tpu_custom_call.1} parent=1 // pred_check
      _
    $region43: #{tpu_custom_call.1} parent=1 // pred_check_branch
      %73 = sbr.rel (0) target = $region45
    $region44: #{tpu_custom_call.1} parent=1 // pred_region
      _
    $region45: #{tpu_custom_call.1} parent=1 // pred_fallthru
      _
    // Predicated region
    $region46: #{tpu_custom_call.1} parent=1 // pred_check
      _
    $region47: #{tpu_custom_call.1} parent=1 // pred_check_branch
      %75 = sbr.rel (0) target = $region49
    $region48: #{tpu_custom_call.1} parent=1 // pred_region
      %77 = dma.done [#allocation3], 1152
    $region49: #{tpu_custom_call.1} parent=1 // pred_fallthru
      _
    // Predicated region
    $region50: #{tpu_custom_call.1} parent=1 // pred_check
      _
    $region51: #{tpu_custom_call.1} parent=1 // pred_check_branch
      %79 = sbr.rel (0) target = $region53
    $region52: #{tpu_custom_call.1} parent=1 // pred_region
      %81 = dma.done [#allocation6], 3072
    $region53: #{tpu_custom_call.1} parent=1 // pred_fallthru
      _
    // Predicated region
    $region54: #{tpu_custom_call.1} parent=1 // pred_check
      _
    $region55: #{tpu_custom_call.1} parent=1 // pred_check_branch
      %83 = sbr.rel (0) target = $region57
    $region56: #{tpu_custom_call.1} parent=1 // pred_region
      %85 = dma.done [#allocation6], 1024
    $region57: #{tpu_custom_call.1} parent=1 // pred_fallthru
      _
    %v87 = vld [vmem:[%s0] sm:$0xf]
    %v88 = vld [vmem:[%s0 + $0x4] sm:$0xf]
    %v89 = vld [vmem:[%s0 + $0x8] sm:$0xf]
    %v90 = vld [vmem:[%s0 + $0xc] sm:$0xf]
    %v91 = vld [vmem:[%s0 + $0x10] sm:$0xf]
    %v92 = vld [vmem:[%s0 + $0x14] sm:$0xf]
    %v93 = vld [vmem:[%s0 + $0x18] sm:$0xf]
    %v94 = vld [vmem:[%s0 + $0x1c] sm:$0x3]
    %v95 = vld [vmem:[%s1] sm:$0xf]
    %v96 = vld [vmem:[%s1 + $0x4] sm:$0x3]
    %v105 = vunpack.c.l.b16 %v87
    %v106 = vunpack.c.l.b16 %v88
    %v107 = vunpack.c.l.b16 %v89
    %v108 = vunpack.c.l.b16 %v90
    %v109 = vunpack.c.l.b16 %v91
    %v110 = vunpack.c.l.b16 %v92
    %v111 = vunpack.c.l.b16 %v93
    %v112 = vunpack.c.l.b16 %v94
    %v113 = vpack.c.b16 %v106, %v105
    %v114 = vpack.c.b16 %v108, %v107
    %v115 = vpack.c.b16 %v110, %v109
    %v116 = vpack.c.b16 %v112, %v111
    %v119 = vunpack.c.l.b16 %v95
    %v120 = vunpack.c.l.b16 %v96
    %v121 = vpack.c.b16 %v120, %v119
    %vm122 = vcmask 97280
    %v124 = vsel %vm122, %v113, 0
    %v127 = vsel %vm122, %v114, 0
    %v130 = vsel %vm122, %v115, 0
    %v133 = vsel %vm122, %v116, 0
    %vm135 = vcmask 1045504
    %v137 = vsel %vm135, %v121, 0
    %139 = vmatpush.bf16.msra.mxu0 0
    %140 = vmatpush.bf16.msra.mxu0 0
    %141 = vmatpush.bf16.msra.mxu0 0
    %142 = vmatpush.bf16.msra.mxu0 0
    %143 = vmatpush.bf16.msra.mxu0 0
    %144 = vmatpush.bf16.msra.mxu0 0
    %145 = vmatpush.bf16.msra.mxu0 0
    %146 = vmatpush.bf16.msra.mxu0 %v137
    %147 = vmatmul.bf16.gmra.mxu0 %v124
    %v148 = vpop.f32.mrf.mxu0
    %v149 = vadd.f32 0.0, %v148
    %v150 = vpop.f32.mrf.mxu0
    %v151 = vadd.f32 0.0, %v150
    %152 = vmatmul.bf16.gmra.mxu0 %v127
    %v153 = vpop.f32.mrf.mxu0
    %v154 = vadd.f32 0.0, %v153
    %v155 = vpop.f32.mrf.mxu0
    %v156 = vadd.f32 0.0, %v155
    %157 = vmatmul.bf16.gmra.mxu0 %v130
    %v158 = vpop.f32.mrf.mxu0
    %v159 = vadd.f32 0.0, %v158
    %v160 = vpop.f32.mrf.mxu0
    %v161 = vadd.f32 0.0, %v160
    %162 = vmatmul.bf16.gmra.mxu0 %v133
    %v163 = vpop.f32.mrf.mxu0
    %v164 = vadd.f32 0.0, %v163
    %v165 = vpop.f32.mrf.mxu0
    %v166 = vadd.f32 0.0, %v165
    %167 = vdwg.mxu0
    %v168 = vld [vmem:[%s2] sm:$0x1]
    %v169 = vld [vmem:[%s3] sm:$0x1]
    %v170 = vadd.f32 %v149, %v151
    %v171 = vadd.f32 %v170, %v154
    %v172 = vadd.f32 %v171, %v156
    %v173 = vadd.f32 %v172, %v159
    %v174 = vadd.f32 %v173, %v161
    %v175 = vadd.f32 %v174, %v164
    %vm176 = vcmask 1043456
    %v177 = vsel %vm176, %v166, 0.0
    %v178 = vadd.f32 %v175, %v177
    %v179 = vrot.slane %v178, 4
    %v180 = vadd.f32 %v178, %v179
    %v181 = vrot.slane %v180, 2
    %v182 = vadd.f32 %v180, %v181
    %v183 = vrot.slane %v182, 1
    %v184 = vadd.f32 %v182, %v183
    %v185 = vmul.f32 %v149, %v149
    %v186 = vmul.f32 %v151, %v151
    %v187 = vmul.f32 %v154, %v154
    %v188 = vmul.f32 %v156, %v156
    %v189 = vmul.f32 %v159, %v159
    %v190 = vmul.f32 %v161, %v161
    %v191 = vmul.f32 %v164, %v164
    %v192 = vmul.f32 %v166, %v166
    %v193 = vadd.f32 %v185, %v186
    %v194 = vadd.f32 %v193, %v187
    %v195 = vadd.f32 %v194, %v188
    %v196 = vadd.f32 %v195, %v189
    %v197 = vadd.f32 %v196, %v190
    %v198 = vadd.f32 %v197, %v191
    %v199 = vsel %vm176, %v192, 0.0
    %v200 = vadd.f32 %v198, %v199
    %v201 = vrot.slane %v200, 4
    %v202 = vadd.f32 %v200, %v201
    %v203 = vrot.slane %v202, 2
    %v204 = vadd.f32 %v202, %v203
    %v205 = vrot.slane %v204, 1
    %v206 = vadd.f32 %v204, %v205
    %v207 = vmul.f32 %v184, 0.016666668
    %v208 = vmul.f32 %v206, 0.016666668
    %v209 = vmul.f32 %v207, %v207
    %v210 = vsub.f32 %v208, %v209
    %v211 = vmax.f32 %v210, 0.0
    %v212 = vadd.f32 %v211, 1e-05
    %v213 = vrsqrt.pop %v212
    %v214 = vmul.f32 %v213, %v212
    %v215 = vmul.f32 %v214, %v213
    %v216 = vmul.f32 0.5, %v215
    %v217 = vsub.f32 1.5, %v216
    %v218 = vmul.f32 %v213, %v217
    %vm219 = vweird.f32 %v212
    %vm220 = vweird.f32 %v213
    %vm221 = vmor %vm219, %vm220
    %v222 = vsel %vm221, %v213, %v218
    %v223 = vmul.f32 %v168, %v222
    %v224 = vmul.f32 %v207, %v223
    %v225 = vsub.f32 %v169, %v224
    %v227 = vperm.slane %v223, 0
    %v229 = vmul.f32 %v149, %v227
    %v230 = vmul.f32 %v151, %v227
    %v231 = vmul.f32 %v154, %v227
    %v232 = vmul.f32 %v156, %v227
    %v233 = vmul.f32 %v159, %v227
    %v234 = vmul.f32 %v161, %v227
    %v235 = vmul.f32 %v164, %v227
    %v236 = vmul.f32 %v166, %v227
    %v238 = vperm.slane %v225, 0
    %v240 = vadd.f32 %v229, %v238
    %v241 = vadd.f32 %v230, %v238
    %v242 = vadd.f32 %v231, %v238
    %v243 = vadd.f32 %v232, %v238
    %v244 = vadd.f32 %v233, %v238
    %v245 = vadd.f32 %v234, %v238
    %v246 = vadd.f32 %v235, %v238
    %v247 = vadd.f32 %v236, %v238
    %v248 = vmax.f32 %v240, 0.0
    %v249 = vmax.f32 %v241, 0.0
    %v250 = vmax.f32 %v242, 0.0
    %v251 = vmax.f32 %v243, 0.0
    %v252 = vmax.f32 %v244, 0.0
    %v253 = vmax.f32 %v245, 0.0
    %v254 = vmax.f32 %v246, 0.0
    %v255 = vmax.f32 %v247, 0.0
    %v256 = vld [vmem:[#allocation2] sm:$0xff]
    %v257 = vld [vmem:[#allocation2 + $0x8] sm:$0xff]
    %v258 = vld [vmem:[#allocation2 + $0x10] sm:$0xff]
    %vm259 = vcmask 490496
    %v261 = vsel %vm259, %v256, 0
    %v264 = vsel %vm259, %v257, 0
    %v267 = vsel %vm259, %v258, 0
    %v270 = vsel %vm176, %v255, 0
    %272 = vmatpush.msra.mxu0 0.0
    %273 = vmatpush.msra.mxu0 0.0
    %274 = vmatpush.msra.mxu0 0.0
    %275 = vmatpush.msra.mxu0 0.0
    %276 = vmatpush.msra.mxu0 0.0
    %277 = vmatpush.msra.mxu0 0.0
    %278 = vmatpush.msra.mxu0 0.0
    %279 = vmatpush.msra.mxu0 0.0
    %280 = vmatpush.msra.mxu0 %v270
    %281 = vmatpush.msra.mxu0 %v254
    %282 = vmatpush.msra.mxu0 %v253
    %283 = vmatpush.msra.mxu0 %v252
    %284 = vmatpush.msra.mxu0 %v251
    %285 = vmatpush.msra.mxu0 %v250
    %286 = vmatpush.msra.mxu0 %v249
    %287 = vmatpush.msra.mxu0 %v248
    %288 = vmatmul.f32.gmra.mxu0 %v261
    %v289 = vpop.f32.mrf.mxu0
    %v290 = vadd.f32 0.0, %v289
    %291 = vmatmul.f32.gmra.mxu0 %v264
    %v292 = vpop.f32.mrf.mxu0
    %v293 = vadd.f32 0.0, %v292
    %294 = vmatmul.f32.gmra.mxu0 %v267
    %v295 = vpop.f32.mrf.mxu0
    %v296 = vadd.f32 0.0, %v295
    %297 = vdwg.mxu0
    %s298 = scalar_lea.vmem [#allocation2], 24
    %v299 = vld [vmem:[%s298] sm:$0xff]
    %v300 = vld [vmem:[%s298 + $0x8] sm:$0xff]
    %v301 = vld [vmem:[%s298 + $0x10] sm:$0xff]
    %v303 = vsel %vm259, %v299, 0
    %v306 = vsel %vm259, %v300, 0
    %v309 = vsel %vm259, %v301, 0
    %311 = vmatpush.msra.mxu0 0.0
    %312 = vmatpush.msra.mxu0 0.0
    %313 = vmatpush.msra.mxu0 0.0
    %314 = vmatpush.msra.mxu0 0.0
    %315 = vmatpush.msra.mxu0 0.0
    %316 = vmatpush.msra.mxu0 0.0
    %317 = vmatpush.msra.mxu0 0.0
    %318 = vmatpush.msra.mxu0 0.0
    %319 = vmatpush.msra.mxu0 %v270
    %320 = vmatpush.msra.mxu0 %v254
    %321 = vmatpush.msra.mxu0 %v253
    %322 = vmatpush.msra.mxu0 %v252
    %323 = vmatpush.msra.mxu0 %v251
    %324 = vmatpush.msra.mxu0 %v250
    %325 = vmatpush.msra.mxu0 %v249
    %326 = vmatpush.msra.mxu0 %v248
    %327 = vmatmul.f32.gmra.mxu0 %v303
    %v328 = vpop.f32.mrf.mxu0
    %v329 = vadd.f32 0.0, %v328
    %330 = vmatmul.f32.gmra.mxu0 %v306
    %v331 = vpop.f32.mrf.mxu0
    %v332 = vadd.f32 0.0, %v331
    %333 = vmatmul.f32.gmra.mxu0 %v309
    %v334 = vpop.f32.mrf.mxu0
    %v335 = vadd.f32 0.0, %v334
    %336 = vdwg.mxu0
    %s337 = scalar_lea.vmem [#allocation2], 48
    %v338 = vld [vmem:[%s337] sm:$0xff]
    %v339 = vld [vmem:[%s337 + $0x8] sm:$0xff]
    %v340 = vld [vmem:[%s337 + $0x10] sm:$0xff]
    %v342 = vsel %vm259, %v338, 0
    %v345 = vsel %vm259, %v339, 0
    %v348 = vsel %vm259, %v340, 0
    %350 = vmatpush.msra.mxu0 0.0
    %351 = vmatpush.msra.mxu0 0.0
    %352 = vmatpush.msra.mxu0 0.0
    %353 = vmatpush.msra.mxu0 0.0
    %354 = vmatpush.msra.mxu0 0.0
    %355 = vmatpush.msra.mxu0 0.0
    %356 = vmatpush.msra.mxu0 0.0
    %357 = vmatpush.msra.mxu0 0.0
    %358 = vmatpush.msra.mxu0 %v270
    %359 = vmatpush.msra.mxu0 %v254
    %360 = vmatpush.msra.mxu0 %v253
    %361 = vmatpush.msra.mxu0 %v252
    %362 = vmatpush.msra.mxu0 %v251
    %363 = vmatpush.msra.mxu0 %v250
    %364 = vmatpush.msra.mxu0 %v249
    %365 = vmatpush.msra.mxu0 %v248
    %366 = vmatmul.f32.gmra.mxu0 %v342
    %v367 = vpop.f32.mrf.mxu0
    %v368 = vadd.f32 0.0, %v367
    %369 = vmatmul.f32.gmra.mxu0 %v345
    %v370 = vpop.f32.mrf.mxu0
    %v371 = vadd.f32 0.0, %v370
    %372 = vmatmul.f32.gmra.mxu0 %v348
    %v373 = vpop.f32.mrf.mxu0
    %v374 = vadd.f32 0.0, %v373
    %375 = vdwg.mxu0
    %v376 = vpack.c.bf16 %v293, %v290
    %v377 = vpack.c.bf16 %v332, %v329
    %v378 = vpack.c.bf16 %v371, %v368
    %v379 = vpack.c.bf16 %v296, %v296
    %v380 = vpack.c.bf16 %v335, %v335
    %v381 = vpack.c.bf16 %v374, %v374
    %v382 = vld [vmem:[#allocation5] sm:$0xf]
    %v383 = vld [vmem:[#allocation5 + $0x4] sm:$0xf]
    %v384 = vld [vmem:[#allocation5 + $0x8] sm:$0xf]
    %v385 = vld [vmem:[#allocation5 + $0xc] sm:$0xf]
    %v386 = vld [vmem:[#allocation5 + $0x10] sm:$0xf]
    %v387 = vld [vmem:[#allocation5 + $0x14] sm:$0xf]
    %v388 = vld [vmem:[#allocation5 + $0x18] sm:$0xf]
    %v389 = vld [vmem:[#allocation5 + $0x1c] sm:$0xf]
    %v390 = vld [vmem:[#allocation5 + $0x20] sm:$0xf]
    %v391 = vld [vmem:[#allocation5 + $0x24] sm:$0xf]
    %v392 = vld [vmem:[#allocation5 + $0x28] sm:$0xf]
    %v393 = vld [vmem:[#allocation5 + $0x2c] sm:$0xf]
    %v394 = vld [vmem:[#allocation5 + $0x30] sm:$0xf]
    %v395 = vld [vmem:[#allocation5 + $0x34] sm:$0xf]
    %v396 = vld [vmem:[#allocation5 + $0x38] sm:$0xf]
    %v397 = vld [vmem:[#allocation5 + $0x3c] sm:$0xf]
    %v398 = vld [vmem:[#allocation5 + $0x40] sm:$0xf]
    %v399 = vld [vmem:[#allocation5 + $0x44] sm:$0xf]
    %v400 = vld [vmem:[#allocation5 + $0x48] sm:$0xf]
    %v401 = vld [vmem:[#allocation5 + $0x4c] sm:$0xf]
    %v402 = vld [vmem:[#allocation5 + $0x50] sm:$0xf]
    %v403 = vld [vmem:[#allocation5 + $0x54] sm:$0xf]
    %v404 = vld [vmem:[#allocation5 + $0x58] sm:$0xf]
    %v405 = vld [vmem:[#allocation5 + $0x5c] sm:$0xf]
    %v406 = vld [vmem:[#allocation5 + $0x60] sm:$0xf]
    %v407 = vld [vmem:[#allocation5 + $0x64] sm:$0xf]
    %v408 = vld [vmem:[#allocation5 + $0x68] sm:$0xf]
    %v409 = vld [vmem:[#allocation5 + $0x6c] sm:$0xf]
    %v410 = vld [vmem:[#allocation5 + $0x70] sm:$0xf]
    %v411 = vld [vmem:[#allocation5 + $0x74] sm:$0xf]
    %v412 = vld [vmem:[#allocation5 + $0x78] sm:$0xf]
    %v413 = vld [vmem:[#allocation5 + $0x7c] sm:$0xf]
    %v414 = vld [vmem:[#allocation5 + $0x80] sm:$0xf]
    %v415 = vld [vmem:[#allocation5 + $0x84] sm:$0xf]
    %v416 = vld [vmem:[#allocation5 + $0x88] sm:$0xf]
    %v417 = vld [vmem:[#allocation5 + $0x8c] sm:$0xf]
    %v418 = vld [vmem:[#allocation5 + $0x90] sm:$0xf]
    %v419 = vld [vmem:[#allocation5 + $0x94] sm:$0xf]
    %v420 = vld [vmem:[#allocation5 + $0x98] sm:$0xf]
    %v421 = vld [vmem:[#allocation5 + $0x9c] sm:$0xf]
    %v422 = vld [vmem:[#allocation5 + $0xa0] sm:$0xf]
    %v423 = vld [vmem:[#allocation5 + $0xa4] sm:$0xf]
    %v424 = vld [vmem:[#allocation5 + $0xa8] sm:$0xf]
    %v425 = vld [vmem:[#allocation5 + $0xac] sm:$0xf]
    %v426 = vld [vmem:[#allocation5 + $0xb0] sm:$0xf]
    %v427 = vld [vmem:[#allocation5 + $0xb4] sm:$0xf]
    %v428 = vld [vmem:[#allocation5 + $0xb8] sm:$0xf]
    %v429 = vld [vmem:[#allocation5 + $0xbc] sm:$0xf]
    %v478 = vunpack.c.l.b16 %v382
    %v479 = vunpack.c.l.b16 %v383
    %v480 = vunpack.c.l.b16 %v384
    %v481 = vunpack.c.l.b16 %v385
    %v482 = vunpack.c.l.b16 %v386
    %v483 = vunpack.c.l.b16 %v387
    %v484 = vunpack.c.l.b16 %v388
    %v485 = vunpack.c.l.b16 %v389
    %v486 = vunpack.c.l.b16 %v390
    %v487 = vunpack.c.l.b16 %v391
    %v488 = vunpack.c.l.b16 %v392
    %v489 = vunpack.c.l.b16 %v393
    %v490 = vunpack.c.l.b16 %v394
    %v491 = vunpack.c.l.b16 %v395
    %v492 = vunpack.c.l.b16 %v396
    %v493 = vunpack.c.l.b16 %v397
    %v494 = vunpack.c.l.b16 %v398
    %v495 = vunpack.c.l.b16 %v399
    %v496 = vunpack.c.l.b16 %v400
    %v497 = vunpack.c.l.b16 %v401
    %v498 = vunpack.c.l.b16 %v402
    %v499 = vunpack.c.l.b16 %v403
    %v500 = vunpack.c.l.b16 %v404
    %v501 = vunpack.c.l.b16 %v405
    %v502 = vunpack.c.l.b16 %v406
    %v503 = vunpack.c.l.b16 %v407
    %v504 = vunpack.c.l.b16 %v408
    %v505 = vunpack.c.l.b16 %v409
    %v506 = vunpack.c.l.b16 %v410
    %v507 = vunpack.c.l.b16 %v411
    %v508 = vunpack.c.l.b16 %v412
    %v509 = vunpack.c.l.b16 %v413
    %v510 = vunpack.c.l.b16 %v414
    %v511 = vunpack.c.l.b16 %v415
    %v512 = vunpack.c.l.b16 %v416
    %v513 = vunpack.c.l.b16 %v417
    %v514 = vunpack.c.l.b16 %v418
    %v515 = vunpack.c.l.b16 %v419
    %v516 = vunpack.c.l.b16 %v420
    %v517 = vunpack.c.l.b16 %v421
    %v518 = vunpack.c.l.b16 %v422
    %v519 = vunpack.c.l.b16 %v423
    %v520 = vunpack.c.l.b16 %v424
    %v521 = vunpack.c.l.b16 %v425
    %v522 = vunpack.c.l.b16 %v426
    %v523 = vunpack.c.l.b16 %v427
    %v524 = vunpack.c.l.b16 %v428
    %v525 = vunpack.c.l.b16 %v429
    %v526 = vpack.c.b16 %v479, %v478
    %v527 = vpack.c.b16 %v481, %v480
    %v528 = vpack.c.b16 %v483, %v482
    %v529 = vpack.c.b16 %v485, %v484
    %v530 = vpack.c.b16 %v487, %v486
    %v531 = vpack.c.b16 %v489, %v488
    %v532 = vpack.c.b16 %v491, %v490
    %v533 = vpack.c.b16 %v493, %v492
    %v534 = vpack.c.b16 %v495, %v494
    %v535 = vpack.c.b16 %v497, %v496
    %v536 = vpack.c.b16 %v499, %v498
    %v537 = vpack.c.b16 %v501, %v500
    %v538 = vpack.c.b16 %v503, %v502
    %v539 = vpack.c.b16 %v505, %v504
    %v540 = vpack.c.b16 %v507, %v506
    %v541 = vpack.c.b16 %v509, %v508
    %v542 = vpack.c.b16 %v511, %v510
    %v543 = vpack.c.b16 %v513, %v512
    %v544 = vpack.c.b16 %v515, %v514
    %v545 = vpack.c.b16 %v517, %v516
    %v546 = vpack.c.b16 %v519, %v518
    %v547 = vpack.c.b16 %v521, %v520
    %v548 = vpack.c.b16 %v523, %v522
    %v549 = vpack.c.b16 %v525, %v524
    %574 = vmatpush.bf16.msra.mxu0 %v533
    %575 = vmatpush.bf16.msra.mxu0 %v532
    %576 = vmatpush.bf16.msra.mxu0 %v531
    %577 = vmatpush.bf16.msra.mxu0 %v530
    %578 = vmatpush.bf16.msra.mxu0 %v529
    %579 = vmatpush.bf16.msra.mxu0 %v528
    %580 = vmatpush.bf16.msra.mxu0 %v527
    %581 = vmatpush.bf16.msra.mxu0 %v526
    %582 = vmatmul.bf16.gmra.mxu0 %v376
    %v583 = vpop.f32.mrf.mxu0
    %v584 = vadd.f32 0.0, %v583
    %v585 = vpop.f32.mrf.mxu0
    %v586 = vadd.f32 0.0, %v585
    %587 = vmatmul.bf16.gmra.mxu0 %v379
    %v588 = vpop.f32.mrf.mxu0
    %v589 = vadd.f32 0.0, %v588
    %v590 = vpop.f32.mrf.mxu0
    %591 = vdwg.mxu0
    %592 = vmatpush.bf16.msra.mxu0 %v541
    %593 = vmatpush.bf16.msra.mxu0 %v540
    %594 = vmatpush.bf16.msra.mxu0 %v539
    %595 = vmatpush.bf16.msra.mxu0 %v538
    %596 = vmatpush.bf16.msra.mxu0 %v537
    %597 = vmatpush.bf16.msra.mxu0 %v536
    %598 = vmatpush.bf16.msra.mxu0 %v535
    %599 = vmatpush.bf16.msra.mxu0 %v534
    %600 = vmatmul.bf16.gmra.mxu0 %v377
    %v601 = vpop.f32.mrf.mxu0
    %v602 = vadd.f32 %v584, %v601
    %v603 = vpop.f32.mrf.mxu0
    %v604 = vadd.f32 %v586, %v603
    %605 = vmatmul.bf16.gmra.mxu0 %v380
    %v606 = vpop.f32.mrf.mxu0
    %v607 = vadd.f32 %v589, %v606
    %v608 = vpop.f32.mrf.mxu0
    %609 = vdwg.mxu0
    %610 = vmatpush.bf16.msra.mxu0 %v549
    %611 = vmatpush.bf16.msra.mxu0 %v548
    %612 = vmatpush.bf16.msra.mxu0 %v547
    %613 = vmatpush.bf16.msra.mxu0 %v546
    %614 = vmatpush.bf16.msra.mxu0 %v545
    %615 = vmatpush.bf16.msra.mxu0 %v544
    %616 = vmatpush.bf16.msra.mxu0 %v543
    %617 = vmatpush.bf16.msra.mxu0 %v542
    %618 = vmatmul.bf16.gmra.mxu0 %v378
    %v619 = vpop.f32.mrf.mxu0
    %v620 = vadd.f32 %v602, %v619
    %v621 = vpop.f32.mrf.mxu0
    %v622 = vadd.f32 %v604, %v621
    %623 = vmatmul.bf16.gmra.mxu0 %v381
    %v624 = vpop.f32.mrf.mxu0
    %v625 = vadd.f32 %v607, %v624
    %v626 = vpop.f32.mrf.mxu0
    %627 = vdwg.mxu0
    %v628 = vld [vmem:[%s6] sm:$0x1]
    %v629 = vld [vmem:[%s7] sm:$0x1]
    %v630 = vadd.f32 %v620, %v622
    %v631 = vadd.f32 %v630, %v625
    %v632 = vrot.slane %v631, 4
    %v633 = vadd.f32 %v631, %v632
    %v634 = vrot.slane %v633, 2
    %v635 = vadd.f32 %v633, %v634
    %v636 = vrot.slane %v635, 1
    %v637 = vadd.f32 %v635, %v636
    %v638 = vmul.f32 %v620, %v620
    %v639 = vmul.f32 %v622, %v622
    %v640 = vmul.f32 %v625, %v625
    %v641 = vadd.f32 %v638, %v639
    %v642 = vadd.f32 %v641, %v640
    %v643 = vrot.slane %v642, 4
    %v644 = vadd.f32 %v642, %v643
    %v645 = vrot.slane %v644, 2
    %v646 = vadd.f32 %v644, %v645
    %v647 = vrot.slane %v646, 1
    %v648 = vadd.f32 %v646, %v647
    %v649 = vmul.f32 %v637, 0.041666668
    %v650 = vmul.f32 %v648, 0.041666668
    %v651 = vmul.f32 %v649, %v649
    %v652 = vsub.f32 %v650, %v651
    %v653 = vmax.f32 %v652, 0.0
    %v654 = vadd.f32 %v653, 1e-05
    %v655 = vrsqrt.pop %v654
    %v656 = vmul.f32 %v655, %v654
    %v657 = vmul.f32 %v656, %v655
    %v658 = vmul.f32 0.5, %v657
    %v659 = vsub.f32 1.5, %v658
    %v660 = vmul.f32 %v655, %v659
    %vm661 = vweird.f32 %v654
    %vm662 = vweird.f32 %v655
    %vm663 = vmor %vm661, %vm662
    %v664 = vsel %vm663, %v655, %v660
    %v665 = vmul.f32 %v628, %v664
    %v666 = vmul.f32 %v649, %v665
    %v667 = vsub.f32 %v629, %v666
    %v669 = vperm.slane %v665, 0
    %v671 = vmul.f32 %v620, %v669
    %v672 = vmul.f32 %v622, %v669
    %v673 = vmul.f32 %v625, %v669
    %v675 = vperm.slane %v667, 0
    %v677 = vadd.f32 %v671, %v675
    %v678 = vadd.f32 %v672, %v675
    %v679 = vadd.f32 %v673, %v675
    %v680 = vmax.f32 %v677, 0.0
    %v681 = vmax.f32 %v678, 0.0
    %v682 = vmax.f32 %v679, 0.0
    %v683 = vld [vmem:[%s8] sm:$0xff]
    %v684 = vld [vmem:[%s8 + $0x8] sm:$0x3]
    %vm685 = vcmask 195584
    %v687 = vsel %vm685, %v683, 0
    %v690 = vsel %vm685, %v684, 0
    %692 = vmatpush.msra.mxu0 0.0
    %693 = vmatpush.msra.mxu0 0.0
    %694 = vmatpush.msra.mxu0 0.0
    %695 = vmatpush.msra.mxu0 0.0
    %696 = vmatpush.msra.mxu0 0.0
    %697 = vmatpush.msra.mxu0 0.0
    %698 = vmatpush.msra.mxu0 0.0
    %699 = vmatpush.msra.mxu0 0.0
    %700 = vmatpush.msra.mxu0 0.0
    %701 = vmatpush.msra.mxu0 0.0
    %702 = vmatpush.msra.mxu0 0.0
    %703 = vmatpush.msra.mxu0 0.0
    %704 = vmatpush.msra.mxu0 0.0
    %705 = vmatpush.msra.mxu0 %v682
    %706 = vmatpush.msra.mxu0 %v681
    %707 = vmatpush.msra.mxu0 %v680
    %708 = vmatmul.f32.gmra.mxu0 %v687
    %v709 = vpop.f32.mrf.mxu0
    %v710 = vadd.f32 0.0, %v709
    %711 = vmatmul.f32.gmra.mxu0 %v690
    %v712 = vpop.f32.mrf.mxu0
    %v713 = vadd.f32 0.0, %v712
    %714 = vdwg.mxu0
    %v715 = vpack.c.bf16 %v713, %v710
    %v716 = vld [vmem:[#allocation7] sm:$0xf]
    %v717 = vld [vmem:[#allocation7 + $0x4] sm:$0xf]
    %v718 = vld [vmem:[#allocation7 + $0x8] sm:$0xf]
    %v719 = vld [vmem:[#allocation7 + $0xc] sm:$0xf]
    %v720 = vld [vmem:[#allocation7 + $0x10] sm:$0xf]
    %v721 = vld [vmem:[#allocation7 + $0x14] sm:$0xf]
    %v722 = vld [vmem:[#allocation7 + $0x18] sm:$0xf]
    %v723 = vld [vmem:[#allocation7 + $0x1c] sm:$0xf]
    %v724 = vld [vmem:[#allocation7 + $0x20] sm:$0xf]
    %v725 = vld [vmem:[#allocation7 + $0x24] sm:$0xf]
    %v726 = vld [vmem:[#allocation7 + $0x28] sm:$0xf]
    %v727 = vld [vmem:[#allocation7 + $0x2c] sm:$0xf]
    %v728 = vld [vmem:[#allocation7 + $0x30] sm:$0xf]
    %v729 = vld [vmem:[#allocation7 + $0x34] sm:$0xf]
    %v730 = vld [vmem:[#allocation7 + $0x38] sm:$0xf]
    %v731 = vld [vmem:[#allocation7 + $0x3c] sm:$0xf]
    %v732 = vld [vmem:[%s10] sm:$0x1]
    %v734 = vperm.slane %v732, 0
    %v752 = vunpack.c.l.b16 %v716
    %v753 = vunpack.c.l.b16 %v717
    %v754 = vunpack.c.l.b16 %v718
    %v755 = vunpack.c.l.b16 %v719
    %v756 = vunpack.c.l.b16 %v720
    %v757 = vunpack.c.l.b16 %v721
    %v758 = vunpack.c.l.b16 %v722
    %v759 = vunpack.c.l.b16 %v723
    %v760 = vunpack.c.l.b16 %v724
    %v761 = vunpack.c.l.b16 %v725
    %v762 = vunpack.c.l.b16 %v726
    %v763 = vunpack.c.l.b16 %v727
    %v764 = vunpack.c.l.b16 %v728
    %v765 = vunpack.c.l.b16 %v729
    %v766 = vunpack.c.l.b16 %v730
    %v767 = vunpack.c.l.b16 %v731
    %v768 = vpack.c.b16 %v753, %v752
    %v769 = vpack.c.b16 %v755, %v754
    %v770 = vpack.c.b16 %v757, %v756
    %v771 = vpack.c.b16 %v759, %v758
    %v772 = vpack.c.b16 %v761, %v760
    %v773 = vpack.c.b16 %v763, %v762
    %v774 = vpack.c.b16 %v765, %v764
    %v775 = vpack.c.b16 %v767, %v766
    %784 = vmatpush.bf16.msra.mxu0 %v775
    %785 = vmatpush.bf16.msra.mxu0 %v774
    %786 = vmatpush.bf16.msra.mxu0 %v773
    %787 = vmatpush.bf16.msra.mxu0 %v772
    %788 = vmatpush.bf16.msra.mxu0 %v771
    %789 = vmatpush.bf16.msra.mxu0 %v770
    %790 = vmatpush.bf16.msra.mxu0 %v769
    %791 = vmatpush.bf16.msra.mxu0 %v768
    %792 = vmatmul.bf16.gmra.mxu0 %v715
    %v793 = vpop.f32.mrf.mxu0
    %v794 = vadd.f32 %v734, %v793
    %v795 = vpop.f32.mrf.mxu0
    %v796 = vadd.f32 %v734, %v795
    %797 = vdwg.mxu0
    %798 = vst [vmem:[#allocation8] sm:$0xff] %v794
    %799 = vst [vmem:[#allocation8 + $0x8] sm:$0x3] %v796
    // Predicated region
    $region58: #{tpu_custom_call.1} parent=1 // pred_check
      _
    $region59: #{tpu_custom_call.1} parent=1 // pred_check_branch
      %801 = sbr.rel (0) target = $region61
    $region60: #{tpu_custom_call.1} parent=1 // pred_region
      %803 = vsyncadd [#allocation4], 0
      %s804 = sshll.u32 [#allocation8], 4
      %s805 = int_to_ptr.vmem [resolvable:$true] %s804
      %s806 = sshll.u32 %s11, 4
      %s807 = int_to_ptr.hbm [resolvable:$true] %s806
      %812 = dma.vmem_to_hbm [thread:$0]  %s805, 256, %s807, [#allocation4], 128, 128, 8
    $region61: #{tpu_custom_call.1} parent=1 // pred_fallthru
      _
    // Predicated region
    $region62: #{tpu_custom_call.1} parent=1 // pred_check
      _
    $region63: #{tpu_custom_call.1} parent=1 // pred_check_branch
      %814 = sbr.rel (0) target = $region65
    $region64: #{tpu_custom_call.1} parent=1 // pred_region
      %816 = dma.done [#allocation4], 256
    $region65: #{tpu_custom_call.1} parent=1 // pred_fallthru
      _
    %817 = vsyncpa [#allocation3], 1
    %818 = vsyncpa [#allocation6], 1
    %819 = vsyncpa [#allocation4], 1

</llo_original>
